<compile_context>
chip_gen: v5e
topology: v5e:2x2
jax: 0.10.0
libtpu: 0.0.40
codegen_flags: <defaults>
</compile_context>

<pallas_src>
import functools
import math

import jax
import jax.numpy as jnp
from jax.experimental import pallas as pl
from jax.experimental.pallas import tpu as pltpu


# ----------------------------------------------------------------------------
# Buffer setup (plain JAX glue): replica of the PyTorch __init__ `pe` buffer.
# Built directly in the activation dtype; layout (max_len, 1, d_model) matches
# the registered buffer.
# ----------------------------------------------------------------------------
def make_positional_encoding(d_model: int, max_len: int = 5000,
                             dtype=jnp.float32) -> jnp.ndarray:
    position = jnp.arange(max_len, dtype=jnp.float32)[:, None]             # (max_len, 1)
    div_term = jnp.exp(
        jnp.arange(0, d_model, 2, dtype=jnp.float32)
        * (-math.log(10000.0) / d_model)
    )                                                                      # (ceil(d/2),)
    angles = position * div_term                                           # (max_len, ceil(d/2))
    pe = jnp.zeros((max_len, d_model), dtype=jnp.float32)
    pe = pe.at[:, 0::2].set(jnp.sin(angles))
    pe = pe.at[:, 1::2].set(jnp.cos(angles)[:, : d_model // 2])
    return pe[:, None, :].astype(dtype)                                    # (max_len, 1, d_model)


# ----------------------------------------------------------------------------
# Kernel: out[s, b*D + d] = x[s, b*D + d] (*scale) + pe[s, d]
#   x_ref / o_ref: (TS, B*D) lane-dense tiles; pe_ref: (TS, D) tile.
#   The batch broadcast is a lane replication of the small pe tile in vregs —
#   VPU work hidden under the HBM DMA of an otherwise memory-bound kernel.
# ----------------------------------------------------------------------------
def _pe_add_kernel(x_ref, pe_ref, o_ref, *, batch: int, scale):
    x = x_ref[...]                                           # (TS, B*D)
    pe_row = pe_ref[...]                                     # (TS, D)
    if batch > 1:
        pe_wide = jnp.concatenate([pe_row] * batch, axis=-1)  # (TS, B*D)
    else:
        pe_wide = pe_row
    if scale is not None:
        x = x * jnp.asarray(scale, dtype=x.dtype)
    o_ref[...] = x + pe_wide


# ----------------------------------------------------------------------------
# Sizing helpers (generation-aware, byte-based)
# ----------------------------------------------------------------------------
def _sublane_multiple(dtype) -> int:
    # 8 rows/vreg for 32-bit, 16 for 16-bit, 32 for 8-bit dtypes.
    return max(8, 32 // jnp.dtype(dtype).itemsize)


def _vmem_capacity_bytes() -> int:
    try:
        return int(pltpu.get_tpu_info().vmem_capacity_bytes)
    except Exception:
        return 64 << 20  # conservative: v7x per-TC VMEM (v5e/v6e have 128 MiB)


def _per_row_vmem_bytes(bd: int, d: int, itemsize: int) -> int:
    # Double-buffered x + out + pe tiles, plus one tile-sized temporary for the
    # lane-replicated pe built inside the kernel.
    return (2 * (2 * bd + d) + bd) * itemsize


def _max_seq_tile_for_vmem(bd: int, d: int, itemsize: int, vmem_cap: int) -> int:
    budget = int(vmem_cap * 0.45)  # keep the working set well under scoped VMEM
    return max(1, budget // _per_row_vmem_bytes(bd, d, itemsize))


def _round_seq_tile(ts: int, s: int, sub: int) -> int:
    ts = min(ts, s)
    if ts >= s:
        return s                       # full-extent block: always legal
    if ts < sub:
        return min(sub, s)             # keep the (8,128)-rule satisfied
    return (ts // sub) * sub


def _auto_seq_tile(s: int, bd: int, d: int, itemsize: int, sub: int,
                   vmem_cap: int) -> int:
    ts = _max_seq_tile_for_vmem(bd, d, itemsize, vmem_cap)
    # Bytes-per-step target: ~8 MiB of x per step is already at the HBM
    # roofline; bigger tiles only add VMEM pressure.
    row_x_bytes = bd * itemsize
    target_step_bytes = 8 << 20
    if ts * row_x_bytes > target_step_bytes:
        ts = max(1, target_step_bytes // row_x_bytes)
    return _round_seq_tile(ts, s, sub)


# ----------------------------------------------------------------------------
# Wrapper
# ----------------------------------------------------------------------------
def positional_encoding_forward(x: jnp.ndarray, pe: jnp.ndarray, *,
                                seq_tile: int | None = None,
                                scale: float | None = None,
                                donate_x: bool = False) -> jnp.ndarray:
    """x: (seq_len, batch, d_model); pe: (max_len, 1, d_model) or (max_len, d_model)."""
    s, b, d = x.shape
    if pe.ndim == 3:
        assert pe.shape[1] == 1 and pe.shape[2] == d
        pe2 = pe.reshape(pe.shape[0], d)
    else:
        assert pe.ndim == 2 and pe.shape[1] == d
        pe2 = pe
    assert pe2.shape[0] >= s, "max_len must be >= seq_len"
    if pe2.dtype != x.dtype:
        pe2 = pe2.astype(x.dtype)      # one-time cast; prefer building pe in x.dtype

    bd = b * d
    itemsize = jnp.dtype(x.dtype).itemsize
    sub = _sublane_multiple(x.dtype)
    vmem_cap = _vmem_capacity_bytes()

    if seq_tile is None:
        seq_tile = _auto_seq_tile(s, bd, d, itemsize, sub, vmem_cap)
    else:
        # Validate user-passed tiles against the generation's VMEM budget.
        seq_tile = min(seq_tile, _max_seq_tile_for_vmem(bd, d, itemsize, vmem_cap))
        seq_tile = _round_seq_tile(max(1, seq_tile), s, sub)

    # v7x megacore: make sure the "parallel" axis has >= 2 steps when the
    # sequence is long enough, so both TensorCores stream concurrently.
    if pl.cdiv(s, seq_tile) == 1 and s >= 2 * sub:
        half = -(-s // 2)
        seq_tile = max(sub, (half // sub) * sub)

    grid = (pl.cdiv(s, seq_tile),)

    per_step_bytes = seq_tile * _per_row_vmem_bytes(bd, d, itemsize)
    vmem_limit = int(min(vmem_cap * 3 // 4,
                         max(per_step_bytes + (4 << 20), 16 << 20)))
    # TODO(synk): tile the lane (B*D) axis as well for extreme B*D per row that
    # cannot fit even a sublane-multiple of sequence rows in VMEM.

    x2 = x.reshape(s, bd)  # free metadata reshape of the contiguous (S, B, D) layout
    kernel = functools.partial(_pe_add_kernel, batch=b, scale=scale)

    out2 = pl.pallas_call(
        kernel,
        out_shape=jax.ShapeDtypeStruct((s, bd), x.dtype),
        grid_spec=pltpu.PrefetchScalarGridSpec(
            num_scalar_prefetch=0,
            grid=grid,
            in_specs=[
                # x: (seq_tile, B*D) — sublane-dense rows, lane-dense columns
                # whenever B*D is a multiple of 128.
                pl.BlockSpec((seq_tile, bd), lambda i: (i, 0)),
                # pe: (seq_tile, D) — 2-D, no size-1 sublane dim, so no hidden
                # 8-16x sublane padding in VMEM.
                pl.BlockSpec((seq_tile, d), lambda i: (i, 0)),
            ],
            out_specs=pl.BlockSpec((seq_tile, bd), lambda i: (i, 0)),
        ),
        compiler_params=pltpu.CompilerParams(
            dimension_semantics=("parallel",),   # independent tiles; 2 TCs on v7x
            vmem_limit_bytes=vmem_limit,
        ),
        input_output_aliases=({0: 0} if donate_x else {}),
    )(x2, pe2)

    return out2.reshape(s, b, d)


if __name__ == "__main__":
    # Small demo shapes consistent with the module's (seq, batch, d_model) layout.
    seq_len, batch, d_model = 8, 2, 32
    max_len = 64  # > seq_len; PyTorch default is 5000

    key = jax.random.PRNGKey(0)
    x = jax.random.normal(key, (seq_len, batch, d_model), dtype=jnp.float32)
    pe = make_positional_encoding(d_model, max_len, dtype=x.dtype)

    out = positional_encoding_forward(x, pe)
    out = jax.block_until_ready(out)

    ref = x + pe[:seq_len]
    assert out.shape == x.shape and out.dtype == x.dtype
    assert jnp.allclose(out, ref, atol=1e-6), "mismatch vs reference"

    # Boundary-block check: seq_len == max_len and seq_tile does not divide it
    # (exercises the padded last block for x, pe and the masked output write).
    seq_len_b, max_len_b = 12, 12
    key_b = jax.random.PRNGKey(1)
    x_b = jax.random.normal(key_b, (seq_len_b, batch, d_model), dtype=jnp.float32)
    pe_b = make_positional_encoding(d_model, max_len_b, dtype=x_b.dtype)

    out_b = positional_encoding_forward(x_b, pe_b, seq_tile=8)
    out_b = jax.block_until_ready(out_b)
    ref_b = x_b + pe_b[:seq_len_b]
    assert out_b.shape == x_b.shape and out_b.dtype == x_b.dtype
    assert jnp.allclose(out_b, ref_b, atol=1e-6), "boundary-tile mismatch vs reference"

    print("KERNEL_OK")
</pallas_src>

<mosaic_0001>
module attributes {stable_mosaic.version = 11 : i64} {
  func.func @_pe_add_kernel(%arg0: i32, %arg1: memref<8x64xf32, #tpu.memory_space<vmem>>, %arg2: memref<8x32xf32, #tpu.memory_space<vmem>>, %arg3: memref<8x64xf32, #tpu.memory_space<vmem>>) attributes {dimension_semantics = [#tpu.dimension_semantics<parallel>], iteration_bounds = array<i64: 1>, scalar_prefetch = 0 : i64, scratch_operands = 0 : i64, tpu.core_type = #tpu.core_type<tc>, window_params = [{transform_indices = @transform_0, window_bounds = array<i64: 8, 64>}, {transform_indices = @transform_1, window_bounds = array<i64: 8, 32>}, {transform_indices = @transform_2, window_bounds = array<i64: 8, 64>}]} {
    %c0 = arith.constant 0 : index
    %c0_0 = arith.constant 0 : index
    %0 = vector.load %arg1[%c0, %c0_0] : memref<8x64xf32, #tpu.memory_space<vmem>>, vector<8x64xf32>
    %c0_1 = arith.constant 0 : index
    %c0_2 = arith.constant 0 : index
    %1 = vector.load %arg2[%c0_1, %c0_2] : memref<8x32xf32, #tpu.memory_space<vmem>>, vector<8x32xf32>
    %2 = tpu.concatenate %1, %1 in 1 : vector<8x32xf32>, vector<8x32xf32> -> vector<8x64xf32>
    %3 = arith.addf %0, %2 : vector<8x64xf32>
    %c0_3 = arith.constant 0 : index
    %c0_4 = arith.constant 0 : index
    %4 = vector.load %arg3[%c0_3, %c0_4] : memref<8x64xf32, #tpu.memory_space<vmem>>, vector<8x64xf32>
    tpu.vector_store %arg3[%c0_3, %c0_4], %3 {strides = array<i32>} : memref<8x64xf32, #tpu.memory_space<vmem>>, vector<8x64xf32>,
    return
  }
  func.func @transform_0(%arg0: i32) -> (i32, i32) {
    %c0_i32 = arith.constant 0 : i32
    %c0_i32_0 = arith.constant 0 : i32
    return %arg0, %c0_i32 : i32, i32
  }
  func.func @transform_1(%arg0: i32) -> (i32, i32) {
    %c0_i32 = arith.constant 0 : i32
    %c0_i32_0 = arith.constant 0 : i32
    return %arg0, %c0_i32 : i32, i32
  }
  func.func @transform_2(%arg0: i32) -> (i32, i32) {
    %c0_i32 = arith.constant 0 : i32
    %c0_i32_0 = arith.constant 0 : i32
    return %arg0, %c0_i32 : i32, i32
  }
}

</mosaic_0001>

<llo_original>
// kernel: tpu_custom_call.1
$region0: #{tpu_custom_call.1}
  #allocation0 [shape = 'u32[]', space=smem, size = 0x4, offset = 0x4, fixed_abs, tag = 'smem constant byte address 0x4 - core index']
  #allocation1 [shape = 'u32[72,128]{1,0:T(1,128)}', space=vmem, size = 0x9000, scoped, tag = 'internal scratch']
  %s0 = inlined_call_operand.vmem [shape: f32[8,64], index: 0, kind: input, shape index: {}]
  %s1 = inlined_call_operand.vmem [shape: f32[64,32], index: 1, kind: input, shape index: {}]
  %s2 = inlined_call_operand.hbm [shape: f32[8,64], index: 2, kind: output, shape index: {}]
  %s3 = sld [smem:[#allocation0]]
  $region18: #{tpu_custom_call.1} parent=0
    _
  %s5 = ssub.s32 1, %s3
  %s6 = scalar_select 0, %s5, %s3
  $region1: #{tpu_custom_call.1} parent=0
    #allocation2 [shape = 'u8[4096]{0}', space=vmem, size = 0x1000, scoped, tag = 'output window, operand 0, single buffered']
    #allocation3 [shape = 's32[1]{0}', space=sflag, size = 0x4, scoped, tag = 'scoped memory for tpu_custom_call.1']
    %7 = vsyncpa [#allocation3], 0
    // Predicated region
    $region2: #{tpu_custom_call.1} parent=1 // pred_check
      _
    $region3: #{tpu_custom_call.1} parent=1 // pred_check_branch
      %9 = sbr.rel (0) target = $region5
    $region4: #{tpu_custom_call.1} parent=1 // pred_region
      _
    $region5: #{tpu_custom_call.1} parent=1 // pred_fallthru
      _
    // Predicated region
    $region6: #{tpu_custom_call.1} parent=1 // pred_check
      _
    $region7: #{tpu_custom_call.1} parent=1 // pred_check_branch
      %11 = sbr.rel (0) target = $region9
    $region8: #{tpu_custom_call.1} parent=1 // pred_region
      _
    $region9: #{tpu_custom_call.1} parent=1 // pred_fallthru
      _
    %v12 = vld [vmem:[%s0] sm:$0xff]
    %v13 = vld [vmem:[%s1] sm:$0xff]
    %15 = vrot.lane.b32.xlu0 %v13, 32
    %v16 = vpop.permute.xlu0 %15
    %vm18 = vcmask 261120
    %v19 = vsel %vm18, %v13, %v16
    %v20 = vadd.f32 %v12, %v19
    %vm21 = vcmask 523264
    %22 = vst.msk [vmem:[#allocation2] sm:$0xff] %vm21, %v20
    // Predicated region
    $region10: #{tpu_custom_call.1} parent=1 // pred_check
      _
    $region11: #{tpu_custom_call.1} parent=1 // pred_check_branch
      %24 = sbr.rel (0) target = $region13
    $region12: #{tpu_custom_call.1} parent=1 // pred_region
      %26 = vsyncadd [#allocation3], 0
      %s28 = sshll.u32 [#allocation2], 4
      %s29 = int_to_ptr.vmem [resolvable:$true] %s28
      %s30 = sshll.u32 %s2, 4
      %s31 = int_to_ptr.hbm [resolvable:$true] %s30
      %33 = dma.vmem_to_hbm [thread:$0]  %s29, 128, %s31, [#allocation3]
    $region13: #{tpu_custom_call.1} parent=1 // pred_fallthru
      _
    // Predicated region
    $region14: #{tpu_custom_call.1} parent=1 // pred_check
      _
    $region15: #{tpu_custom_call.1} parent=1 // pred_check_branch
      %35 = sbr.rel (0) target = $region17
    $region16: #{tpu_custom_call.1} parent=1 // pred_region
      %37 = dma.done [#allocation3], 128
    $region17: #{tpu_custom_call.1} parent=1 // pred_fallthru
      _
    %38 = vsyncpa [#allocation3], 1

</llo_original>
